<compile_context>
chip_gen: v5e
topology: v5e:2x2
jax: 0.10.0
libtpu: 0.0.40
codegen_flags: <defaults>
</compile_context>

<pallas_src>
import functools

import jax
import jax.numpy as jnp
import numpy as np
from jax.experimental import pallas as pl
from jax.experimental.pallas import tpu as pltpu


# ----------------------------------------------------------------------------
# Fused ConvAE forward kernel (single invocation, whole batch row-stacked)
# ----------------------------------------------------------------------------
def _conv_ae_kernel(x_ref, w1_ref, b1_ref, g2_ref, w2_ref, b2_ref,
                    u1_ref, w3_ref, b3_ref, w4_ref, b4_ref, o_ref,
                    *, n, l0, k1, k2, k3, k4):
    f32, bf16 = jnp.float32, jnp.bfloat16

    # Static lengths (trace-time Python ints).
    l1 = l0 - k1 + 1                          # enc1 output length
    l1s = l1 - k2 + 1                         # stride-1 positions for enc2
    l2 = (l1 - k2) // 2 + 1                   # enc2 output length (stride 2)
    lp1 = 2 * (l2 - 1) + 1 + 2 * (k3 - 1)     # zero-upsampled + "full"-padded length
    l3 = 2 * (l2 - 1) + k3                    # dec1 output length
    lp2 = l3 + 2 * (k4 - 1)                   # padded length for dec2
    l4 = l3 + k4 - 1                          # dec2 output length (== l0)

    def im2col(h, rows_per_batch, out_rows, k):
        """Tap-concat im2col on batch-stacked rows: (n*R, C) -> (n*out_rows, k*C)."""
        taps = []
        for j in range(k):
            taps.append(jnp.concatenate(
                [h[b * rows_per_batch + j: b * rows_per_batch + j + out_rows, :]
                 for b in range(n)], axis=0))
        return jnp.concatenate(taps, axis=1)

    # Weights / selection matrices are already bf16, biases f32; load once (hoisted).
    w1, w2, w3, w4 = w1_ref[...], w2_ref[...], w3_ref[...], w4_ref[...]
    g2, u1 = g2_ref[...], u1_ref[...]
    x = x_ref[...].astype(bf16)                                    # (n*l0, c_in)

    # ---- enc1: Conv1d(c_in, 64, k=3, s=1) + ReLU — one fat matmul --------------
    h1 = jnp.dot(im2col(x, l0, l1, k1), w1, preferred_element_type=f32)
    h1 = jnp.maximum(h1 + b1_ref[...], 0.0)                        # (n*l1, 64) f32
    # Dropout(0.1) is identity at inference.
    # TODO(synk): training-mode dropout (pltpu.prng_seed / prng_random_bits) not implemented.

    # ---- enc2: Conv1d(64, z, k=4, s=2) + ReLU ----------------------------------
    # im2col at all stride-1 positions (slices only, no FLOPs), gather the stride-2
    # rows with a precomputed 0/1 matrix BEFORE the weight matmul, then one
    # 256-deep matmul.
    x2 = jnp.dot(g2, im2col(h1.astype(bf16), l1, l1s, k2),
                 preferred_element_type=f32).astype(bf16)          # (n*l2, k2*64)
    h2 = jnp.dot(x2, w2, preferred_element_type=f32)
    h2 = jnp.maximum(h2 + b2_ref[...], 0.0)                        # (n*l2, z) f32

    # ---- dec1: ConvTranspose1d(z, 64, k=4, s=2) + ReLU -------------------------
    # Zero-upsample + "full" pad via ONE precomputed 0/1 scatter matmul, then a
    # regular stride-1 conv with tap-reversed weights as one matmul.
    up = jnp.dot(u1, h2.astype(bf16),
                 preferred_element_type=f32).astype(bf16)          # (n*lp1, z)
    h3 = jnp.dot(im2col(up, lp1, l3, k3), w3, preferred_element_type=f32)
    h3 = jnp.maximum(h3 + b3_ref[...], 0.0)                        # (n*l3, 64) f32
    # Dropout(0.1) is identity at inference.

    # ---- dec2: ConvTranspose1d(64, c_in, k=3, s=1) + Tanh ----------------------
    # Stride-1 transposed conv == "full" conv with tap-reversed weights.
    h3b = h3.astype(bf16)
    zpad = jnp.zeros((k4 - 1, h3b.shape[1]), bf16)
    pieces = []
    for b in range(n):
        pieces += [zpad, h3b[b * l3:(b + 1) * l3, :], zpad]
    hp = jnp.concatenate(pieces, axis=0)                           # (n*lp2, 64)
    y = jnp.dot(im2col(hp, lp2, l4, k4), w4, preferred_element_type=f32)
    y = jnp.tanh(y + b4_ref[...])                                  # (n*l4, c_in) f32

    # Single stacked store (wrapper does the cheap (N, C, L) relayout).
    o_ref[...] = y.astype(o_ref.dtype)


# ----------------------------------------------------------------------------
# Parameter preprocessing (one-time, outside the forward)
# ----------------------------------------------------------------------------
def preprocess_params(params, batch, input_dim):
    """PyTorch-layout params -> kernel-friendly tap-fused bf16 layouts + 0/1 matrices.

    Conv1d weight (C_out, C_in, K)          -> (K*C_in, C_out)        bf16
    ConvTranspose1d weight (C_in, C_out, K) -> tap-reversed (K*C_in, C_out) bf16
    bias (C,)                               -> (1, C)                 f32
    plus precomputed gather (enc2 stride-2) and upsample+pad scatter (dec1).
    """
    bf16 = jnp.bfloat16
    k1 = params["enc1_w"].shape[2]
    k2 = params["enc2_w"].shape[2]
    k3 = params["dec1_w"].shape[2]
    k4 = params["dec2_w"].shape[2]
    c1 = params["enc1_w"].shape[0]
    c_in = params["enc1_w"].shape[1]
    z = params["enc2_w"].shape[0]

    l1 = input_dim - k1 + 1
    l1s = l1 - k2 + 1
    l2 = (l1 - k2) // 2 + 1
    lp1 = 2 * (l2 - 1) + 1 + 2 * (k3 - 1)

    # Tap-fused weights.
    w1 = jnp.transpose(params["enc1_w"], (2, 1, 0)).reshape(k1 * c_in, c1).astype(bf16)
    w2 = jnp.transpose(params["enc2_w"], (2, 1, 0)).reshape(k2 * c1, z).astype(bf16)
    w3 = jnp.flip(jnp.transpose(params["dec1_w"], (2, 0, 1)), axis=0)
    w3 = w3.reshape(k3 * z, c1).astype(bf16)
    w4 = jnp.flip(jnp.transpose(params["dec2_w"], (2, 0, 1)), axis=0)
    w4 = w4.reshape(k4 * c1, c_in).astype(bf16)

    # enc2 gather: picks stride-1 im2col row 2m within each batch block.
    g2 = np.zeros((batch * l2, batch * l1s), np.float32)
    for b in range(batch):
        for m in range(l2):
            g2[b * l2 + m, b * l1s + 2 * m] = 1.0

    # dec1 zero-upsample (stride 2) + (k3-1)-pad scatter within each batch block.
    u1 = np.zeros((batch * lp1, batch * l2), np.float32)
    for b in range(batch):
        for m in range(l2):
            u1[b * lp1 + (k3 - 1) + 2 * m, b * l2 + m] = 1.0

    return dict(
        w1=w1, b1=params["enc1_b"].reshape(1, -1).astype(jnp.float32),
        g2=jnp.asarray(g2, bf16),
        w2=w2, b2=params["enc2_b"].reshape(1, -1).astype(jnp.float32),
        u1=jnp.asarray(u1, bf16),
        w3=w3, b3=params["dec1_b"].reshape(1, -1).astype(jnp.float32),
        w4=w4, b4=params["dec2_b"].reshape(1, -1).astype(jnp.float32),
    )


# ----------------------------------------------------------------------------
# Forward wrapper: single fused pallas_call, no grid (whole batch in one step)
# ----------------------------------------------------------------------------
@jax.jit
def conv_ae_forward(x, kp):
    n, c_in, l0 = x.shape
    c1 = kp["w1"].shape[1]
    z = kp["w2"].shape[1]
    k1 = kp["w1"].shape[0] // c_in
    k2 = kp["w2"].shape[0] // c1
    k3 = kp["w3"].shape[0] // z
    k4 = kp["w4"].shape[0] // c1

    l1 = l0 - k1 + 1
    l1s = l1 - k2 + 1
    l2 = (l1 - k2) // 2 + 1
    lp1 = 2 * (l2 - 1) + 1 + 2 * (k3 - 1)
    l3 = 2 * (l2 - 1) + k3
    l4 = l3 + k4 - 1
    assert l4 == l0, (l4, l0)

    # Layout plumbing: batch-stacked channels-last rows so the kernel is pure matmuls.
    x_rows = jnp.transpose(x, (0, 2, 1)).reshape(n * l0, c_in)

    kernel = functools.partial(_conv_ae_kernel,
                               n=n, l0=l0, k1=k1, k2=k2, k3=k3, k4=k4)

    vmem = pl.BlockSpec(memory_space=pltpu.MemorySpace.VMEM)
    operands = (x_rows, kp["w1"], kp["b1"], kp["g2"], kp["w2"], kp["b2"],
                kp["u1"], kp["w3"], kp["b3"], kp["w4"], kp["b4"])

    macs = ((n * l1) * (k1 * c_in) * c1
            + (n * l2) * (n * l1s) * (k2 * c1)
            + (n * l2) * (k2 * c1) * z
            + (n * lp1) * (n * l2) * z
            + (n * l3) * (k3 * z) * c1
            + (n * l4) * (k4 * c1) * c_in)
    bytes_accessed = (sum(a.size * a.dtype.itemsize for a in operands)
                      + n * l4 * c_in * x.dtype.itemsize)

    y = pl.pallas_call(
        kernel,
        out_shape=jax.ShapeDtypeStruct((n * l4, c_in), x.dtype),
        in_specs=[vmem] * len(operands),
        out_specs=vmem,
        cost_estimate=pl.CostEstimate(
            flops=2 * macs,
            transcendentals=n * l4 * c_in,          # tanh
            bytes_accessed=bytes_accessed),
    )(*operands)

    return jnp.transpose(y.reshape(n, l4, c_in), (0, 2, 1))      # back to (N, C, L)


# ----------------------------------------------------------------------------
# Parameter init (mimics PyTorch default U(-1/sqrt(fan_in*K), +...))
# ----------------------------------------------------------------------------
def init_params(key, input_channel, z_dim):
    def uniform(k, shape, fan_in, ksize):
        bound = 1.0 / jnp.sqrt(jnp.float32(fan_in * ksize))
        return jax.random.uniform(k, shape, jnp.float32, -bound, bound)

    ks = jax.random.split(key, 8)
    return {
        # Conv1d weights: (C_out, C_in, K)
        "enc1_w": uniform(ks[0], (64, input_channel, 3), input_channel, 3),
        "enc1_b": uniform(ks[1], (64,), input_channel, 3),
        "enc2_w": uniform(ks[2], (z_dim, 64, 4), 64, 4),
        "enc2_b": uniform(ks[3], (z_dim,), 64, 4),
        # ConvTranspose1d weights: (C_in, C_out, K)
        "dec1_w": uniform(ks[4], (z_dim, 64, 4), z_dim, 4),
        "dec1_b": uniform(ks[5], (64,), z_dim, 4),
        "dec2_w": uniform(ks[6], (64, input_channel, 3), 64, 3),
        "dec2_b": uniform(ks[7], (input_channel,), 64, 3),
    }


# ----------------------------------------------------------------------------
# Pure-JAX reference (PyTorch semantics) for correctness checking
# ----------------------------------------------------------------------------
def conv_ae_reference(x, params):
    dn = ("NCH", "OIH", "NCH")

    def conv(h, w, b, s):
        y = jax.lax.conv_general_dilated(h, w, (s,), "VALID", dimension_numbers=dn)
        return y + b[None, :, None]

    def conv_t(h, w, b, s):
        k = w.shape[-1]
        w_conv = jnp.flip(jnp.transpose(w, (1, 0, 2)), axis=-1)
        y = jax.lax.conv_general_dilated(h, w_conv, (1,), [(k - 1, k - 1)],
                                         lhs_dilation=(s,), dimension_numbers=dn)
        return y + b[None, :, None]

    h = jax.nn.relu(conv(x, params["enc1_w"], params["enc1_b"], 1))
    h = jax.nn.relu(conv(h, params["enc2_w"], params["enc2_b"], 2))
    h = jax.nn.relu(conv_t(h, params["dec1_w"], params["dec1_b"], 2))
    return jnp.tanh(conv_t(h, params["dec2_w"], params["dec2_b"], 1))


if __name__ == "__main__":
    batch = 2
    input_channel = 4
    input_dim = 16   # sequence length L
    z_dim = 8

    key = jax.random.PRNGKey(0)
    k_x, k_p = jax.random.split(key)
    x = jax.random.normal(k_x, (batch, input_channel, input_dim), jnp.float32)
    params = init_params(k_p, input_channel, z_dim)
    kparams = preprocess_params(params, batch=batch, input_dim=input_dim)

    out = conv_ae_forward(x, kparams)
    jax.block_until_ready(out)

    # Shape check: encoder 16 -> 14 -> 6; decoder 6 -> 14 -> 16.
    assert out.shape == (batch, input_channel, input_dim), out.shape
    assert bool(jnp.all(jnp.isfinite(out)))

    # Numerical check vs an all-f32 reference. Tolerance sized for bf16 matmul
    # inputs with f32 accumulation (tighter than the previous 2e-2).
    ref = conv_ae_reference(x, params)
    err = float(jnp.max(jnp.abs(out - ref)))
    assert err < 1e-2, err

    print("KERNEL_OK")
</pallas_src>

<mosaic_0001>
module attributes {stable_mosaic.version = 11 : i64} {
  func.func @_conv_ae_kernel(%arg0: memref<32x4xf32, #tpu.memory_space<vmem>>, %arg1: memref<12x64xbf16, #tpu.memory_space<vmem>>, %arg2: memref<1x64xf32, #tpu.memory_space<vmem>>, %arg3: memref<12x22xbf16, #tpu.memory_space<vmem>>, %arg4: memref<256x8xbf16, #tpu.memory_space<vmem>>, %arg5: memref<1x8xf32, #tpu.memory_space<vmem>>, %arg6: memref<34x12xbf16, #tpu.memory_space<vmem>>, %arg7: memref<32x64xbf16, #tpu.memory_space<vmem>>, %arg8: memref<1x64xf32, #tpu.memory_space<vmem>>, %arg9: memref<192x4xbf16, #tpu.memory_space<vmem>>, %arg10: memref<1x4xf32, #tpu.memory_space<vmem>>, %arg11: memref<32x4xf32, #tpu.memory_space<vmem>>) attributes {dimension_semantics = [], scalar_prefetch = 0 : i64, scratch_operands = 0 : i64, tpu.core_type = #tpu.core_type<tc>} {
    %c0 = arith.constant 0 : index
    %c0_0 = arith.constant 0 : index
    %0 = vector.load %arg1[%c0, %c0_0] : memref<12x64xbf16, #tpu.memory_space<vmem>>, vector<12x64xbf16>
    %c0_1 = arith.constant 0 : index
    %c0_2 = arith.constant 0 : index
    %1 = vector.load %arg4[%c0_1, %c0_2] : memref<256x8xbf16, #tpu.memory_space<vmem>>, vector<256x8xbf16>
    %c0_3 = arith.constant 0 : index
    %c0_4 = arith.constant 0 : index
    %2 = vector.load %arg7[%c0_3, %c0_4] : memref<32x64xbf16, #tpu.memory_space<vmem>>, vector<32x64xbf16>
    %c0_5 = arith.constant 0 : index
    %c0_6 = arith.constant 0 : index
    %3 = vector.load %arg9[%c0_5, %c0_6] : memref<192x4xbf16, #tpu.memory_space<vmem>>, vector<192x4xbf16>
    %c0_7 = arith.constant 0 : index
    %c0_8 = arith.constant 0 : index
    %4 = vector.load %arg3[%c0_7, %c0_8] : memref<12x22xbf16, #tpu.memory_space<vmem>>, vector<12x22xbf16>
    %c0_9 = arith.constant 0 : index
    %c0_10 = arith.constant 0 : index
    %5 = vector.load %arg6[%c0_9, %c0_10] : memref<34x12xbf16, #tpu.memory_space<vmem>>, vector<34x12xbf16>
    %c0_11 = arith.constant 0 : index
    %c0_12 = arith.constant 0 : index
    %6 = vector.load %arg0[%c0_11, %c0_12] : memref<32x4xf32, #tpu.memory_space<vmem>>, vector<32x4xf32>
    %7 = arith.truncf %6 : vector<32x4xf32> to vector<32x4xbf16>
    %8 = vector.extract_strided_slice %7 {offsets = [0, 0], sizes = [14, 4], strides = [1, 1]} : vector<32x4xbf16> to vector<14x4xbf16>
    %9 = vector.extract_strided_slice %7 {offsets = [16, 0], sizes = [14, 4], strides = [1, 1]} : vector<32x4xbf16> to vector<14x4xbf16>
    %10 = tpu.concatenate %8, %9 in 0 : vector<14x4xbf16>, vector<14x4xbf16> -> vector<28x4xbf16>
    %11 = vector.extract_strided_slice %7 {offsets = [1, 0], sizes = [14, 4], strides = [1, 1]} : vector<32x4xbf16> to vector<14x4xbf16>
    %12 = vector.extract_strided_slice %7 {offsets = [17, 0], sizes = [14, 4], strides = [1, 1]} : vector<32x4xbf16> to vector<14x4xbf16>
    %13 = tpu.concatenate %11, %12 in 0 : vector<14x4xbf16>, vector<14x4xbf16> -> vector<28x4xbf16>
    %14 = vector.extract_strided_slice %7 {offsets = [2, 0], sizes = [14, 4], strides = [1, 1]} : vector<32x4xbf16> to vector<14x4xbf16>
    %15 = vector.extract_strided_slice %7 {offsets = [18, 0], sizes = [14, 4], strides = [1, 1]} : vector<32x4xbf16> to vector<14x4xbf16>
    %16 = tpu.concatenate %14, %15 in 0 : vector<14x4xbf16>, vector<14x4xbf16> -> vector<28x4xbf16>
    %17 = tpu.concatenate %10, %13, %16 in 1 : vector<28x4xbf16>, vector<28x4xbf16>, vector<28x4xbf16> -> vector<28x12xbf16>
    %cst = arith.constant dense<0.000000e+00> : vector<28x64xf32>
    %18 = tpu.matmul %17, %0, %cst {dimension_numbers = #tpu.dot_dimension_numbers<[1], [0], [0], [1], [0, 0, 1, 1], [], []>} : vector<28x12xbf16>, vector<12x64xbf16>, vector<28x64xf32> -> vector<28x64xf32>
    %c0_13 = arith.constant 0 : index
    %c0_14 = arith.constant 0 : index
    %19 = vector.load %arg2[%c0_13, %c0_14] : memref<1x64xf32, #tpu.memory_space<vmem>>, vector<1x64xf32>
    %20 = vector.broadcast %19 : vector<1x64xf32> to vector<28x64xf32>
    %21 = arith.addf %18, %20 : vector<28x64xf32>
    %cst_15 = arith.constant 0.000000e+00 : f32
    %22 = vector.broadcast %cst_15 : f32 to vector<28x64xf32>
    %23 = arith.maximumf %21, %22 : vector<28x64xf32>
    %24 = arith.truncf %23 : vector<28x64xf32> to vector<28x64xbf16>
    %25 = vector.extract_strided_slice %24 {offsets = [0, 0], sizes = [11, 64], strides = [1, 1]} : vector<28x64xbf16> to vector<11x64xbf16>
    %26 = vector.extract_strided_slice %24 {offsets = [14, 0], sizes = [11, 64], strides = [1, 1]} : vector<28x64xbf16> to vector<11x64xbf16>
    %27 = tpu.concatenate %25, %26 in 0 : vector<11x64xbf16>, vector<11x64xbf16> -> vector<22x64xbf16>
    %28 = vector.extract_strided_slice %24 {offsets = [1, 0], sizes = [11, 64], strides = [1, 1]} : vector<28x64xbf16> to vector<11x64xbf16>
    %29 = vector.extract_strided_slice %24 {offsets = [15, 0], sizes = [11, 64], strides = [1, 1]} : vector<28x64xbf16> to vector<11x64xbf16>
    %30 = tpu.concatenate %28, %29 in 0 : vector<11x64xbf16>, vector<11x64xbf16> -> vector<22x64xbf16>
    %31 = vector.extract_strided_slice %24 {offsets = [2, 0], sizes = [11, 64], strides = [1, 1]} : vector<28x64xbf16> to vector<11x64xbf16>
    %32 = vector.extract_strided_slice %24 {offsets = [16, 0], sizes = [11, 64], strides = [1, 1]} : vector<28x64xbf16> to vector<11x64xbf16>
    %33 = tpu.concatenate %31, %32 in 0 : vector<11x64xbf16>, vector<11x64xbf16> -> vector<22x64xbf16>
    %34 = vector.extract_strided_slice %24 {offsets = [3, 0], sizes = [11, 64], strides = [1, 1]} : vector<28x64xbf16> to vector<11x64xbf16>
    %35 = vector.extract_strided_slice %24 {offsets = [17, 0], sizes = [11, 64], strides = [1, 1]} : vector<28x64xbf16> to vector<11x64xbf16>
    %36 = tpu.concatenate %34, %35 in 0 : vector<11x64xbf16>, vector<11x64xbf16> -> vector<22x64xbf16>
    %37 = tpu.concatenate %27, %30, %33, %36 in 1 : vector<22x64xbf16>, vector<22x64xbf16>, vector<22x64xbf16>, vector<22x64xbf16> -> vector<22x256xbf16>
    %cst_16 = arith.constant dense<0.000000e+00> : vector<12x256xf32>
    %38 = tpu.matmul %4, %37, %cst_16 {dimension_numbers = #tpu.dot_dimension_numbers<[1], [0], [0], [1], [0, 0, 1, 1], [], []>} : vector<12x22xbf16>, vector<22x256xbf16>, vector<12x256xf32> -> vector<12x256xf32>
    %39 = arith.truncf %38 : vector<12x256xf32> to vector<12x256xbf16>
    %cst_17 = arith.constant dense<0.000000e+00> : vector<12x8xf32>
    %40 = tpu.matmul %39, %1, %cst_17 {dimension_numbers = #tpu.dot_dimension_numbers<[1], [0], [0], [1], [0, 0, 1, 1], [], []>} : vector<12x256xbf16>, vector<256x8xbf16>, vector<12x8xf32> -> vector<12x8xf32>
    %c0_18 = arith.constant 0 : index
    %c0_19 = arith.constant 0 : index
    %41 = vector.load %arg5[%c0_18, %c0_19] : memref<1x8xf32, #tpu.memory_space<vmem>>, vector<1x8xf32>
    %42 = vector.broadcast %41 : vector<1x8xf32> to vector<12x8xf32>
    %43 = arith.addf %40, %42 : vector<12x8xf32>
    %cst_20 = arith.constant 0.000000e+00 : f32
    %44 = vector.broadcast %cst_20 : f32 to vector<12x8xf32>
    %45 = arith.maximumf %43, %44 : vector<12x8xf32>
    %46 = arith.truncf %45 : vector<12x8xf32> to vector<12x8xbf16>
    %cst_21 = arith.constant dense<0.000000e+00> : vector<34x8xf32>
    %47 = tpu.matmul %5, %46, %cst_21 {dimension_numbers = #tpu.dot_dimension_numbers<[1], [0], [0], [1], [0, 0, 1, 1], [], []>} : vector<34x12xbf16>, vector<12x8xbf16>, vector<34x8xf32> -> vector<34x8xf32>
    %48 = arith.truncf %47 : vector<34x8xf32> to vector<34x8xbf16>
    %49 = vector.extract_strided_slice %48 {offsets = [0, 0], sizes = [14, 8], strides = [1, 1]} : vector<34x8xbf16> to vector<14x8xbf16>
    %50 = vector.extract_strided_slice %48 {offsets = [17, 0], sizes = [14, 8], strides = [1, 1]} : vector<34x8xbf16> to vector<14x8xbf16>
    %51 = tpu.concatenate %49, %50 in 0 : vector<14x8xbf16>, vector<14x8xbf16> -> vector<28x8xbf16>
    %52 = vector.extract_strided_slice %48 {offsets = [1, 0], sizes = [14, 8], strides = [1, 1]} : vector<34x8xbf16> to vector<14x8xbf16>
    %53 = vector.extract_strided_slice %48 {offsets = [18, 0], sizes = [14, 8], strides = [1, 1]} : vector<34x8xbf16> to vector<14x8xbf16>
    %54 = tpu.concatenate %52, %53 in 0 : vector<14x8xbf16>, vector<14x8xbf16> -> vector<28x8xbf16>
    %55 = vector.extract_strided_slice %48 {offsets = [2, 0], sizes = [14, 8], strides = [1, 1]} : vector<34x8xbf16> to vector<14x8xbf16>
    %56 = vector.extract_strided_slice %48 {offsets = [19, 0], sizes = [14, 8], strides = [1, 1]} : vector<34x8xbf16> to vector<14x8xbf16>
    %57 = tpu.concatenate %55, %56 in 0 : vector<14x8xbf16>, vector<14x8xbf16> -> vector<28x8xbf16>
    %58 = vector.extract_strided_slice %48 {offsets = [3, 0], sizes = [14, 8], strides = [1, 1]} : vector<34x8xbf16> to vector<14x8xbf16>
    %59 = vector.extract_strided_slice %48 {offsets = [20, 0], sizes = [14, 8], strides = [1, 1]} : vector<34x8xbf16> to vector<14x8xbf16>
    %60 = tpu.concatenate %58, %59 in 0 : vector<14x8xbf16>, vector<14x8xbf16> -> vector<28x8xbf16>
    %61 = tpu.concatenate %51, %54, %57, %60 in 1 : vector<28x8xbf16>, vector<28x8xbf16>, vector<28x8xbf16>, vector<28x8xbf16> -> vector<28x32xbf16>
    %cst_22 = arith.constant dense<0.000000e+00> : vector<28x64xf32>
    %62 = tpu.matmul %61, %2, %cst_22 {dimension_numbers = #tpu.dot_dimension_numbers<[1], [0], [0], [1], [0, 0, 1, 1], [], []>} : vector<28x32xbf16>, vector<32x64xbf16>, vector<28x64xf32> -> vector<28x64xf32>
    %c0_23 = arith.constant 0 : index
    %c0_24 = arith.constant 0 : index
    %63 = vector.load %arg8[%c0_23, %c0_24] : memref<1x64xf32, #tpu.memory_space<vmem>>, vector<1x64xf32>
    %64 = vector.broadcast %63 : vector<1x64xf32> to vector<28x64xf32>
    %65 = arith.addf %62, %64 : vector<28x64xf32>
    %cst_25 = arith.constant 0.000000e+00 : f32
    %66 = vector.broadcast %cst_25 : f32 to vector<28x64xf32>
    %67 = arith.maximumf %65, %66 : vector<28x64xf32>
    %68 = arith.truncf %67 : vector<28x64xf32> to vector<28x64xbf16>
    %cst_26 = arith.constant 0.000000e+00 : bf16
    %69 = vector.broadcast %cst_26 : bf16 to vector<2x64xbf16>
    %70 = vector.extract_strided_slice %68 {offsets = [0, 0], sizes = [14, 64], strides = [1, 1]} : vector<28x64xbf16> to vector<14x64xbf16>
    %71 = vector.extract_strided_slice %68 {offsets = [14, 0], sizes = [14, 64], strides = [1, 1]} : vector<28x64xbf16> to vector<14x64xbf16>
    %72 = tpu.concatenate %69, %70, %69, %69, %71, %69 in 0 : vector<2x64xbf16>, vector<14x64xbf16>, vector<2x64xbf16>, vector<2x64xbf16>, vector<14x64xbf16>, vector<2x64xbf16> -> vector<36x64xbf16>
    %73 = vector.extract_strided_slice %72 {offsets = [0, 0], sizes = [16, 64], strides = [1, 1]} : vector<36x64xbf16> to vector<16x64xbf16>
    %74 = vector.extract_strided_slice %72 {offsets = [18, 0], sizes = [16, 64], strides = [1, 1]} : vector<36x64xbf16> to vector<16x64xbf16>
    %75 = tpu.concatenate %73, %74 in 0 : vector<16x64xbf16>, vector<16x64xbf16> -> vector<32x64xbf16>
    %76 = vector.extract_strided_slice %72 {offsets = [1, 0], sizes = [16, 64], strides = [1, 1]} : vector<36x64xbf16> to vector<16x64xbf16>
    %77 = vector.extract_strided_slice %72 {offsets = [19, 0], sizes = [16, 64], strides = [1, 1]} : vector<36x64xbf16> to vector<16x64xbf16>
    %78 = tpu.concatenate %76, %77 in 0 : vector<16x64xbf16>, vector<16x64xbf16> -> vector<32x64xbf16>
    %79 = vector.extract_strided_slice %72 {offsets = [2, 0], sizes = [16, 64], strides = [1, 1]} : vector<36x64xbf16> to vector<16x64xbf16>
    %80 = vector.extract_strided_slice %72 {offsets = [20, 0], sizes = [16, 64], strides = [1, 1]} : vector<36x64xbf16> to vector<16x64xbf16>
    %81 = tpu.concatenate %79, %80 in 0 : vector<16x64xbf16>, vector<16x64xbf16> -> vector<32x64xbf16>
    %82 = tpu.concatenate %75, %78, %81 in 1 : vector<32x64xbf16>, vector<32x64xbf16>, vector<32x64xbf16> -> vector<32x192xbf16>
    %cst_27 = arith.constant dense<0.000000e+00> : vector<32x4xf32>
    %83 = tpu.matmul %82, %3, %cst_27 {dimension_numbers = #tpu.dot_dimension_numbers<[1], [0], [0], [1], [0, 0, 1, 1], [], []>} : vector<32x192xbf16>, vector<192x4xbf16>, vector<32x4xf32> -> vector<32x4xf32>
    %c0_28 = arith.constant 0 : index
    %c0_29 = arith.constant 0 : index
    %84 = vector.load %arg10[%c0_28, %c0_29] : memref<1x4xf32, #tpu.memory_space<vmem>>, vector<1x4xf32>
    %85 = vector.broadcast %84 : vector<1x4xf32> to vector<32x4xf32>
    %86 = arith.addf %83, %85 : vector<32x4xf32>
    %87 = math.tanh %86 : vector<32x4xf32>
    %c0_30 = arith.constant 0 : index
    %c0_31 = arith.constant 0 : index
    %88 = vector.load %arg11[%c0_30, %c0_31] : memref<32x4xf32, #tpu.memory_space<vmem>>, vector<32x4xf32>
    tpu.vector_store %arg11[%c0_30, %c0_31], %87 {strides = array<i32>} : memref<32x4xf32, #tpu.memory_space<vmem>>, vector<32x4xf32>,
    return
  }
}

</mosaic_0001>

<llo_original>
// kernel: conv_ae_forward.1
$region0: #{conv_ae_forward.1}
  #allocation0 [shape = 'u32[]', space=smem, size = 0x4, offset = 0x4, fixed_abs, tag = 'smem constant byte address 0x4 - core index']
  #allocation1 [shape = 'u32[72,128]{1,0:T(1,128)}', space=vmem, size = 0x9000, scoped, tag = 'internal scratch']
  %s0 = inlined_call_operand.vmem [shape: f32[32,4], index: 0, kind: input, shape index: {}]
  %s1 = inlined_call_operand.vmem [shape: bf16[12,64], index: 1, kind: input, shape index: {}]
  %s2 = inlined_call_operand.vmem [shape: f32[1,64], index: 2, kind: input, shape index: {}]
  %s3 = inlined_call_operand.vmem [shape: bf16[12,22], index: 3, kind: input, shape index: {}]
  %s4 = inlined_call_operand.vmem [shape: bf16[256,8], index: 4, kind: input, shape index: {}]
  %s5 = inlined_call_operand.vmem [shape: f32[1,8], index: 5, kind: input, shape index: {}]
  %s6 = inlined_call_operand.vmem [shape: bf16[34,12], index: 6, kind: input, shape index: {}]
  %s7 = inlined_call_operand.vmem [shape: bf16[32,64], index: 7, kind: input, shape index: {}]
  %s8 = inlined_call_operand.vmem [shape: f32[1,64], index: 8, kind: input, shape index: {}]
  %s9 = inlined_call_operand.vmem [shape: bf16[192,4], index: 9, kind: input, shape index: {}]
  %s10 = inlined_call_operand.vmem [shape: f32[1,4], index: 10, kind: input, shape index: {}]
  %s11 = inlined_call_operand.vmem [shape: f32[32,4], index: 11, kind: output, shape index: {}]
  %s12 = sld [smem:[#allocation0]]
  $region54: #{conv_ae_forward.1} parent=0
    _
  %s14 = ssub.s32 1, %s12
  %s15 = scalar_select 0, %s14, %s12
  // Predicated region
  $region2: #{conv_ae_forward.1} parent=0 // pred_check
    _
  $region3: #{conv_ae_forward.1} parent=0 // pred_check_branch
    %17 = sbr.rel (0) target = $region5
  $region4: #{conv_ae_forward.1} parent=0 // pred_region
    _
  $region5: #{conv_ae_forward.1} parent=0 // pred_fallthru
    _
  // Predicated region
  $region6: #{conv_ae_forward.1} parent=0 // pred_check
    _
  $region7: #{conv_ae_forward.1} parent=0 // pred_check_branch
    %19 = sbr.rel (0) target = $region9
  $region8: #{conv_ae_forward.1} parent=0 // pred_region
    _
  $region9: #{conv_ae_forward.1} parent=0 // pred_fallthru
    _
  // Predicated region
  $region10: #{conv_ae_forward.1} parent=0 // pred_check
    _
  $region11: #{conv_ae_forward.1} parent=0 // pred_check_branch
    %21 = sbr.rel (0) target = $region13
  $region12: #{conv_ae_forward.1} parent=0 // pred_region
    _
  $region13: #{conv_ae_forward.1} parent=0 // pred_fallthru
    _
  // Predicated region
  $region14: #{conv_ae_forward.1} parent=0 // pred_check
    _
  $region15: #{conv_ae_forward.1} parent=0 // pred_check_branch
    %23 = sbr.rel (0) target = $region17
  $region16: #{conv_ae_forward.1} parent=0 // pred_region
    _
  $region17: #{conv_ae_forward.1} parent=0 // pred_fallthru
    _
  // Predicated region
  $region18: #{conv_ae_forward.1} parent=0 // pred_check
    _
  $region19: #{conv_ae_forward.1} parent=0 // pred_check_branch
    %25 = sbr.rel (0) target = $region21
  $region20: #{conv_ae_forward.1} parent=0 // pred_region
    _
  $region21: #{conv_ae_forward.1} parent=0 // pred_fallthru
    _
  // Predicated region
  $region22: #{conv_ae_forward.1} parent=0 // pred_check
    _
  $region23: #{conv_ae_forward.1} parent=0 // pred_check_branch
    %27 = sbr.rel (0) target = $region25
  $region24: #{conv_ae_forward.1} parent=0 // pred_region
    _
  $region25: #{conv_ae_forward.1} parent=0 // pred_fallthru
    _
  // Predicated region
  $region26: #{conv_ae_forward.1} parent=0 // pred_check
    _
  $region27: #{conv_ae_forward.1} parent=0 // pred_check_branch
    %29 = sbr.rel (0) target = $region29
  $region28: #{conv_ae_forward.1} parent=0 // pred_region
    _
  $region29: #{conv_ae_forward.1} parent=0 // pred_fallthru
    _
  // Predicated region
  $region30: #{conv_ae_forward.1} parent=0 // pred_check
    _
  $region31: #{conv_ae_forward.1} parent=0 // pred_check_branch
    %31 = sbr.rel (0) target = $region33
  $region32: #{conv_ae_forward.1} parent=0 // pred_region
    _
  $region33: #{conv_ae_forward.1} parent=0 // pred_fallthru
    _
  // Predicated region
  $region34: #{conv_ae_forward.1} parent=0 // pred_check
    _
  $region35: #{conv_ae_forward.1} parent=0 // pred_check_branch
    %33 = sbr.rel (0) target = $region37
  $region36: #{conv_ae_forward.1} parent=0 // pred_region
    _
  $region37: #{conv_ae_forward.1} parent=0 // pred_fallthru
    _
  // Predicated region
  $region38: #{conv_ae_forward.1} parent=0 // pred_check
    _
  $region39: #{conv_ae_forward.1} parent=0 // pred_check_branch
    %35 = sbr.rel (0) target = $region41
  $region40: #{conv_ae_forward.1} parent=0 // pred_region
    _
  $region41: #{conv_ae_forward.1} parent=0 // pred_fallthru
    _
  // Predicated region
  $region42: #{conv_ae_forward.1} parent=0 // pred_check
    _
  $region43: #{conv_ae_forward.1} parent=0 // pred_check_branch
    %37 = sbr.rel (0) target = $region45
  $region44: #{conv_ae_forward.1} parent=0 // pred_region
    _
  $region45: #{conv_ae_forward.1} parent=0 // pred_fallthru
    _
  %v39 = vld [vmem:[%s1] sm:$0xf]
  %v40 = vld [vmem:[%s1 + $0x4] sm:$0x3]
  %v41 = vld [vmem:[%s4] sm:$0xf]
  %v42 = vld [vmem:[%s4 + $0x4] sm:$0xf]
  %v43 = vld [vmem:[%s4 + $0x8] sm:$0xf]
  %v44 = vld [vmem:[%s4 + $0xc] sm:$0xf]
  %v45 = vld [vmem:[%s4 + $0x10] sm:$0xf]
  %v46 = vld [vmem:[%s4 + $0x14] sm:$0xf]
  %v47 = vld [vmem:[%s4 + $0x18] sm:$0xf]
  %v48 = vld [vmem:[%s4 + $0x1c] sm:$0xf]
  %v49 = vld [vmem:[%s4 + $0x20] sm:$0xf]
  %v50 = vld [vmem:[%s4 + $0x24] sm:$0xf]
  %v51 = vld [vmem:[%s4 + $0x28] sm:$0xf]
  %v52 = vld [vmem:[%s4 + $0x2c] sm:$0xf]
  %v53 = vld [vmem:[%s4 + $0x30] sm:$0xf]
  %v54 = vld [vmem:[%s4 + $0x34] sm:$0xf]
  %v55 = vld [vmem:[%s4 + $0x38] sm:$0xf]
  %v56 = vld [vmem:[%s4 + $0x3c] sm:$0xf]
  %v57 = vld [vmem:[%s4 + $0x40] sm:$0xf]
  %v58 = vld [vmem:[%s4 + $0x44] sm:$0xf]
  %v59 = vld [vmem:[%s4 + $0x48] sm:$0xf]
  %v60 = vld [vmem:[%s4 + $0x4c] sm:$0xf]
  %v61 = vld [vmem:[%s4 + $0x50] sm:$0xf]
  %v62 = vld [vmem:[%s4 + $0x54] sm:$0xf]
  %v63 = vld [vmem:[%s4 + $0x58] sm:$0xf]
  %v64 = vld [vmem:[%s4 + $0x5c] sm:$0xf]
  %v65 = vld [vmem:[%s4 + $0x60] sm:$0xf]
  %v66 = vld [vmem:[%s4 + $0x64] sm:$0xf]
  %v67 = vld [vmem:[%s4 + $0x68] sm:$0xf]
  %v68 = vld [vmem:[%s4 + $0x6c] sm:$0xf]
  %v69 = vld [vmem:[%s4 + $0x70] sm:$0xf]
  %v70 = vld [vmem:[%s4 + $0x74] sm:$0xf]
  %v71 = vld [vmem:[%s4 + $0x78] sm:$0xf]
  %v72 = vld [vmem:[%s4 + $0x7c] sm:$0xf]
  %v73 = vld [vmem:[%s7] sm:$0xf]
  %v74 = vld [vmem:[%s7 + $0x4] sm:$0xf]
  %v75 = vld [vmem:[%s7 + $0x8] sm:$0xf]
  %v76 = vld [vmem:[%s7 + $0xc] sm:$0xf]
  %v77 = vld [vmem:[%s9] sm:$0xf]
  %v78 = vld [vmem:[%s9 + $0x4] sm:$0xf]
  %v79 = vld [vmem:[%s9 + $0x8] sm:$0xf]
  %v80 = vld [vmem:[%s9 + $0xc] sm:$0xf]
  %v81 = vld [vmem:[%s9 + $0x10] sm:$0xf]
  %v82 = vld [vmem:[%s9 + $0x14] sm:$0xf]
  %v83 = vld [vmem:[%s9 + $0x18] sm:$0xf]
  %v84 = vld [vmem:[%s9 + $0x1c] sm:$0xf]
  %v85 = vld [vmem:[%s9 + $0x20] sm:$0xf]
  %v86 = vld [vmem:[%s9 + $0x24] sm:$0xf]
  %v87 = vld [vmem:[%s9 + $0x28] sm:$0xf]
  %v88 = vld [vmem:[%s9 + $0x2c] sm:$0xf]
  %v89 = vld [vmem:[%s9 + $0x30] sm:$0xf]
  %v90 = vld [vmem:[%s9 + $0x34] sm:$0xf]
  %v91 = vld [vmem:[%s9 + $0x38] sm:$0xf]
  %v92 = vld [vmem:[%s9 + $0x3c] sm:$0xf]
  %v93 = vld [vmem:[%s9 + $0x40] sm:$0xf]
  %v94 = vld [vmem:[%s9 + $0x44] sm:$0xf]
  %v95 = vld [vmem:[%s9 + $0x48] sm:$0xf]
  %v96 = vld [vmem:[%s9 + $0x4c] sm:$0xf]
  %v97 = vld [vmem:[%s9 + $0x50] sm:$0xf]
  %v98 = vld [vmem:[%s9 + $0x54] sm:$0xf]
  %v99 = vld [vmem:[%s9 + $0x58] sm:$0xf]
  %v100 = vld [vmem:[%s9 + $0x5c] sm:$0xf]
  %v101 = vld [vmem:[%s3] sm:$0xf]
  %v102 = vld [vmem:[%s3 + $0x4] sm:$0x3]
  %v103 = vld [vmem:[%s6] sm:$0xf]
  %v104 = vld [vmem:[%s6 + $0x4] sm:$0xf]
  %v105 = vld [vmem:[%s6 + $0x8] sm:$0xf]
  %v106 = vld [vmem:[%s6 + $0xc] sm:$0xf]
  %v107 = vld [vmem:[%s6 + $0x10] sm:$0x1]
  %v108 = vld [vmem:[%s0] sm:$0xff]
  %v109 = vld [vmem:[%s0 + $0x8] sm:$0xff]
  %v110 = vld [vmem:[%s0 + $0x10] sm:$0xff]
  %v111 = vld [vmem:[%s0 + $0x18] sm:$0xff]
  %v112 = vpack.c.bf16 %v108, %v108
  %v113 = vpack.c.bf16 %v109, %v109
  %v114 = vpack.c.bf16 %v110, %v110
  %v115 = vpack.c.bf16 %v111, %v111
  %v118 = vunpack.c.l.b16 %v112
  %v119 = vunpack.c.l.b16 %v113
  %v120 = vpack.c.b16 %v119, %v118
  %v123 = vunpack.c.l.b16 %v114
  %v124 = vunpack.c.l.b16 %v115
  %v125 = vpack.c.b16 %v124, %v123
  %v126 = vrot.slane %v125, 1
  %vm127 = vcmask 1046528
  %v130 = vsel %vm127, %v120, %v126
  %v131 = vshrl.u32 %v120, 16
  %v133 = vshll.u32 %v120, 16
  %v135 = vrot.slane %v133, 1
  %v136 = vor.u32 %v131, %v135
  %v138 = vshrl.u32 %v125, 16
  %v140 = vrot.slane %v138, 1
  %v141 = vshll.u32 %v125, 16
  %v143 = vrot.slane %v141, 2
  %v144 = vor.u32 %v140, %v143
  %v147 = vsel %vm127, %v136, %v144
  %v148 = vrot.slane %v120, 1
  %v149 = vrot.slane %v125, 2
  %v152 = vsel %vm127, %v148, %v149
  %154 = vrot.lane.b32.xlu0 %v147, 4
  %v155 = vpop.permute.xlu0 %154
  %156 = vrot.lane.b32.xlu0 %v144, 4
  %v157 = vpop.permute.xlu0 %156
  %159 = vrot.lane.b32.xlu0 %v152, 8
  %v160 = vpop.permute.xlu0 %159
  %161 = vrot.lane.b32.xlu0 %v149, 8
  %v162 = vpop.permute.xlu0 %161
  %vm163 = vcmask 31744
  %v165 = vsel %vm163, %v130, %v155
  %v167 = vsel %vm163, %v126, %v157
  %vm168 = vcmask 64512
  %v170 = vsel %vm168, %v165, %v160
  %v172 = vsel %vm168, %v167, %v162
  %v173 = vld [vmem:[%s2] sm:$0x1]
  %v175 = vperm.slane %v173, 0
  %v179 = vunpack.c.l.b16 %v39
  %v180 = vunpack.c.l.b16 %v40
  %v181 = vpack.c.b16 %v180, %v179
  %vm182 = vcmask 97280
  %v183 = vsel %vm182, %v170, 0
  %v185 = vsel %vm182, %v172, 0
  %vm187 = vcmask 1045504
  %v189 = vsel %vm187, %v181, 0
  %191 = vmatpush.bf16.msra.mxu0 0
  %192 = vmatpush.bf16.msra.mxu0 0
  %193 = vmatpush.bf16.msra.mxu0 0
  %194 = vmatpush.bf16.msra.mxu0 0
  %195 = vmatpush.bf16.msra.mxu0 0
  %196 = vmatpush.bf16.msra.mxu0 0
  %197 = vmatpush.bf16.msra.mxu0 0
  %198 = vmatpush.bf16.msra.mxu0 %v189
  %199 = vmatmul.bf16.gmra.mxu0 %v183
  %v200 = vpop.f32.mrf.mxu0
  %v201 = vadd.f32 %v175, %v200
  %v202 = vpop.f32.mrf.mxu0
  %v203 = vadd.f32 %v175, %v202
  %204 = vmatmul.bf16.gmra.mxu0 %v185
  %v205 = vpop.f32.mrf.mxu0
  %v206 = vadd.f32 %v175, %v205
  %v207 = vpop.f32.mrf.mxu0
  %v208 = vadd.f32 %v175, %v207
  %209 = vdwg.mxu0
  %v210 = vmax.f32 %v201, 0.0
  %v211 = vmax.f32 %v203, 0.0
  %v212 = vmax.f32 %v206, 0.0
  %v213 = vmax.f32 %v208, 0.0
  %v214 = vpack.c.bf16 %v210, %v210
  %v215 = vpack.c.bf16 %v211, %v211
  %v216 = vpack.c.bf16 %v212, %v212
  %v217 = vpack.c.bf16 %v213, %v213
  %v220 = vunpack.c.l.b16 %v214
  %v221 = vunpack.c.l.b16 %v215
  %v222 = vpack.c.b16 %v221, %v220
  %v226 = vunpack.c.l.b16 %v216
  %v227 = vunpack.c.l.b16 %v217
  %v228 = vpack.c.b16 %v226, %v221
  %v229 = vpack.c.b16 %v227, %v227
  %vm230 = vsmask.f32 2304
  %v232 = vshrl.u32 %v228, 16
  %v234 = vrot.slane %v232, 5
  %v235 = vshll.u32 %v228, 16
  %v237 = vrot.slane %v235, 6
  %v238 = vor.u32 %v234, %v237
  %v240 = vshll.u32 %v229, 16
  %v242 = vrot.slane %v240, 6
  %v243 = vsel %vm230, %v238, %v242
  %vm245 = vcmask 1045504
  %vm246 = vsmask.f32 5376
  %vm247 = vmand %vm245, %vm246
  %v248 = vsel %vm247, %v222, %v238
  %v250 = vshrl.u32 %v222, 16
  %v252 = vshll.u32 %v222, 16
  %v254 = vrot.slane %v252, 1
  %v255 = vor.u32 %v250, %v254
  %vm257 = vcmask 1041408
  %v258 = vrot.slane %v228, 6
  %v259 = vrot.slane %v229, 6
  %v260 = vsel %vm257, %v258, %v259
  %v262 = vsel %vm247, %v255, %v258
  %v263 = vrot.slane %v222, 1
  %v265 = vpack.c.b16 %v227, %v226
  %v267 = vshrl.u32 %v265, 16
  %v269 = vrot.slane %v267, 2
  %v270 = vshll.u32 %v265, 16
  %v272 = vrot.slane %v270, 3
  %v273 = vor.u32 %v269, %v272
  %v275 = vsel %vm247, %v263, %v273
  %v276 = vrot.slane %v250, 1
  %v277 = vrot.slane %v252, 2
  %v278 = vor.u32 %v276, %v277
  %v280 = vrot.slane %v265, 3
  %v282 = vsel %vm247, %v278, %v280
  %284 = vrot.lane.b32.xlu0 %v262, 64
  %v285 = vpop.permute.xlu0 %284
  %286 = vrot.lane.b32.xlu0 %v260, 64
  %v287 = vpop.permute.xlu0 %286
  %289 = vrot.lane.b32.xlu0 %v282, 64
  %v290 = vpop.permute.xlu0 %289
  %291 = vrot.lane.b32.xlu0 %v280, 64
  %v292 = vpop.permute.xlu0 %291
  %vm293 = vcmask 523264
  %v296 = vsel %vm293, %v248, %v285
  %v300 = vsel %vm293, %v243, %v287
  %v303 = vsel %vm293, %v275, %v290
  %v307 = vsel %vm293, %v273, %v292
  %v310 = vunpack.c.l.b16 %v101
  %v311 = vunpack.c.l.b16 %v102
  %v312 = vpack.c.b16 %v311, %v310
  %vm313 = vcmask 179200
  %v315 = vsel %vm313, %v312, 0
  %vm317 = vcmask 1042432
  %v318 = vsel %vm317, %v300, 0
  %v320 = vsel %vm317, %v307, 0
  %322 = vmatpush.bf16.msra.mxu0 0
  %323 = vmatpush.bf16.msra.mxu0 0
  %324 = vmatpush.bf16.msra.mxu0 0
  %325 = vmatpush.bf16.msra.mxu0 0
  %326 = vmatpush.bf16.msra.mxu0 0
  %327 = vmatpush.bf16.msra.mxu0 0
  %328 = vmatpush.bf16.msra.mxu0 %v318
  %329 = vmatpush.bf16.msra.mxu0 %v296
  %330 = vmatmul.bf16.gmra.mxu0 %v315
  %v331 = vpop.f32.mrf.mxu0
  %v332 = vadd.f32 0.0, %v331
  %v333 = vpop.f32.mrf.mxu0
  %v334 = vadd.f32 0.0, %v333
  %335 = vdwg.mxu0
  %336 = vmatpush.bf16.msra.mxu0 0
  %337 = vmatpush.bf16.msra.mxu0 0
  %338 = vmatpush.bf16.msra.mxu0 0
  %339 = vmatpush.bf16.msra.mxu0 0
  %340 = vmatpush.bf16.msra.mxu0 0
  %341 = vmatpush.bf16.msra.mxu0 0
  %342 = vmatpush.bf16.msra.mxu0 %v320
  %343 = vmatpush.bf16.msra.mxu0 %v303
  %344 = vmatmul.bf16.gmra.mxu0 %v315
  %v345 = vpop.f32.mrf.mxu0
  %v346 = vadd.f32 0.0, %v345
  %v347 = vpop.f32.mrf.mxu0
  %v348 = vadd.f32 0.0, %v347
  %349 = vdwg.mxu0
  %v350 = vpack.c.bf16 %v334, %v332
  %v351 = vpack.c.bf16 %v348, %v346
  %v352 = vld [vmem:[%s5] sm:$0x1]
  %v354 = vperm.slane %v352, 0
  %v388 = vunpack.c.l.b16 %v41
  %v389 = vunpack.c.l.b16 %v42
  %v390 = vunpack.c.l.b16 %v43
  %v391 = vunpack.c.l.b16 %v44
  %v392 = vunpack.c.l.b16 %v45
  %v393 = vunpack.c.l.b16 %v46
  %v394 = vunpack.c.l.b16 %v47
  %v395 = vunpack.c.l.b16 %v48
  %v396 = vunpack.c.l.b16 %v49
  %v397 = vunpack.c.l.b16 %v50
  %v398 = vunpack.c.l.b16 %v51
  %v399 = vunpack.c.l.b16 %v52
  %v400 = vunpack.c.l.b16 %v53
  %v401 = vunpack.c.l.b16 %v54
  %v402 = vunpack.c.l.b16 %v55
  %v403 = vunpack.c.l.b16 %v56
  %v404 = vunpack.c.l.b16 %v57
  %v405 = vunpack.c.l.b16 %v58
  %v406 = vunpack.c.l.b16 %v59
  %v407 = vunpack.c.l.b16 %v60
  %v408 = vunpack.c.l.b16 %v61
  %v409 = vunpack.c.l.b16 %v62
  %v410 = vunpack.c.l.b16 %v63
  %v411 = vunpack.c.l.b16 %v64
  %v412 = vunpack.c.l.b16 %v65
  %v413 = vunpack.c.l.b16 %v66
  %v414 = vunpack.c.l.b16 %v67
  %v415 = vunpack.c.l.b16 %v68
  %v416 = vunpack.c.l.b16 %v69
  %v417 = vunpack.c.l.b16 %v70
  %v418 = vunpack.c.l.b16 %v71
  %v419 = vunpack.c.l.b16 %v72
  %v420 = vpack.c.b16 %v389, %v388
  %v421 = vpack.c.b16 %v391, %v390
  %v422 = vpack.c.b16 %v393, %v392
  %v423 = vpack.c.b16 %v395, %v394
  %v424 = vpack.c.b16 %v397, %v396
  %v425 = vpack.c.b16 %v399, %v398
  %v426 = vpack.c.b16 %v401, %v400
  %v427 = vpack.c.b16 %v403, %v402
  %v428 = vpack.c.b16 %v405, %v404
  %v429 = vpack.c.b16 %v407, %v406
  %v430 = vpack.c.b16 %v409, %v408
  %v431 = vpack.c.b16 %v411, %v410
  %v432 = vpack.c.b16 %v413, %v412
  %v433 = vpack.c.b16 %v415, %v414
  %v434 = vpack.c.b16 %v417, %v416
  %v435 = vpack.c.b16 %v419, %v418
  %452 = vmatpush.bf16.msra.mxu0 %v427
  %453 = vmatpush.bf16.msra.mxu0 %v426
  %454 = vmatpush.bf16.msra.mxu0 %v425
  %455 = vmatpush.bf16.msra.mxu0 %v424
  %456 = vmatpush.bf16.msra.mxu0 %v423
  %457 = vmatpush.bf16.msra.mxu0 %v422
  %458 = vmatpush.bf16.msra.mxu0 %v421
  %459 = vmatpush.bf16.msra.mxu0 %v420
  %460 = vmatmul.bf16.gmra.mxu0 %v350
  %v461 = vpop.f32.mrf.mxu0
  %v462 = vadd.f32 %v354, %v461
  %v463 = vpop.f32.mrf.mxu0
  %v464 = vadd.f32 %v354, %v463
  %465 = vdwg.mxu0
  %466 = vmatpush.bf16.msra.mxu0 %v435
  %467 = vmatpush.bf16.msra.mxu0 %v434
  %468 = vmatpush.bf16.msra.mxu0 %v433
  %469 = vmatpush.bf16.msra.mxu0 %v432
  %470 = vmatpush.bf16.msra.mxu0 %v431
  %471 = vmatpush.bf16.msra.mxu0 %v430
  %472 = vmatpush.bf16.msra.mxu0 %v429
  %473 = vmatpush.bf16.msra.mxu0 %v428
  %474 = vmatmul.bf16.gmra.mxu0 %v351
  %v475 = vpop.f32.mrf.mxu0
  %v476 = vadd.f32 %v462, %v475
  %v477 = vpop.f32.mrf.mxu0
  %v478 = vadd.f32 %v464, %v477
  %479 = vdwg.mxu0
  %v480 = vmax.f32 %v476, 0.0
  %v481 = vmax.f32 %v478, 0.0
  %v482 = vpack.c.bf16 %v481, %v480
  %v488 = vunpack.c.l.b16 %v103
  %v489 = vunpack.c.l.b16 %v104
  %v490 = vunpack.c.l.b16 %v105
  %v491 = vunpack.c.l.b16 %v106
  %v492 = vunpack.c.l.b16 %v107
  %v493 = vpack.c.b16 %v489, %v488
  %v494 = vpack.c.b16 %v491, %v490
  %v495 = vpack.c.b16 %v492, %v492
  %v497 = vsel %vm182, %v493, 0
  %v500 = vsel %vm182, %v494, 0
  %v503 = vsel %vm182, %v495, 0
  %v506 = vsel %vm187, %v482, 0
  %508 = vmatpush.bf16.msra.mxu0 0
  %509 = vmatpush.bf16.msra.mxu0 0
  %510 = vmatpush.bf16.msra.mxu0 0
  %511 = vmatpush.bf16.msra.mxu0 0
  %512 = vmatpush.bf16.msra.mxu0 0
  %513 = vmatpush.bf16.msra.mxu0 0
  %514 = vmatpush.bf16.msra.mxu0 0
  %515 = vmatpush.bf16.msra.mxu0 %v506
  %516 = vmatmul.bf16.gmra.mxu0 %v497
  %v517 = vpop.f32.mrf.mxu0
  %v518 = vadd.f32 0.0, %v517
  %v519 = vpop.f32.mrf.mxu0
  %v520 = vadd.f32 0.0, %v519
  %521 = vmatmul.bf16.gmra.mxu0 %v500
  %v522 = vpop.f32.mrf.mxu0
  %v523 = vadd.f32 0.0, %v522
  %v524 = vpop.f32.mrf.mxu0
  %v525 = vadd.f32 0.0, %v524
  %526 = vmatmul.bf16.gmra.mxu0 %v503
  %v527 = vpop.f32.mrf.mxu0
  %v528 = vadd.f32 0.0, %v527
  %v529 = vpop.f32.mrf.mxu0
  %530 = vdwg.mxu0
  %v531 = vpack.c.bf16 %v518, %v518
  %v532 = vpack.c.bf16 %v520, %v520
  %v533 = vpack.c.bf16 %v523, %v523
  %v534 = vpack.c.bf16 %v525, %v525
  %v535 = vpack.c.bf16 %v528, %v528
  %v538 = vunpack.c.l.b16 %v531
  %v539 = vunpack.c.l.b16 %v532
  %v540 = vpack.c.b16 %v539, %v538
  %v543 = vunpack.c.l.b16 %v533
  %v544 = vunpack.c.l.b16 %v534
  %v545 = vpack.c.b16 %v544, %v543
  %v547 = vshrl.u32 %v545, 16
  %v549 = vrot.slane %v547, 1
  %v550 = vshll.u32 %v545, 16
  %v552 = vrot.slane %v550, 2
  %v553 = vor.u32 %v549, %v552
  %v556 = vsel %vm127, %v540, %v553
  %v557 = vshrl.u32 %v540, 16
  %v559 = vshll.u32 %v540, 16
  %v561 = vrot.slane %v559, 1
  %v562 = vor.u32 %v557, %v561
  %v563 = vrot.slane %v545, 2
  %v566 = vsel %vm127, %v562, %v563
  %v567 = vrot.slane %v540, 1
  %v569 = vunpack.c.l.b16 %v535
  %v570 = vpack.c.b16 %v569, %v569
  %v571 = vrot.slane %v547, 2
  %v572 = vrot.slane %v550, 3
  %v573 = vor.u32 %v571, %v572
  %v575 = vshll.u32 %v570, 16
  %v577 = vrot.slane %v575, 3
  %v578 = vsel %vm246, %v573, %v577
  %v581 = vsel %vm127, %v567, %v573
  %v582 = vpack.c.b16 %v543, %v543
  %vm583 = vsmask.f32 6400
  %v584 = vrot.slane %v557, 1
  %v585 = vrot.slane %v559, 2
  %v586 = vor.u32 %v584, %v585
  %v588 = vshll.u32 %v582, 16
  %v590 = vrot.slane %v588, 2
  %v591 = vsel %vm583, %v586, %v590
  %vm592 = vcmask 1044480
  %v593 = vrot.slane %v545, 3
  %v594 = vrot.slane %v570, 3
  %v595 = vsel %vm592, %v593, %v594
  %v598 = vsel %vm127, %v591, %v593
  %600 = vrot.lane.b32.xlu0 %v566, 8
  %v601 = vpop.permute.xlu0 %600
  %602 = vrot.lane.b32.xlu0 %v563, 8
  %v603 = vpop.permute.xlu0 %602
  %605 = vrot.lane.b32.xlu0 %v581, 16
  %v606 = vpop.permute.xlu0 %605
  %607 = vrot.lane.b32.xlu0 %v578, 16
  %v608 = vpop.permute.xlu0 %607
  %610 = vrot.lane.b32.xlu0 %v598, 24
  %v611 = vpop.permute.xlu0 %610
  %612 = vrot.lane.b32.xlu0 %v595, 24
  %v613 = vpop.permute.xlu0 %612
  %v615 = vsel %vm168, %v556, %v601
  %v617 = vsel %vm168, %v553, %v603
  %vm618 = vcmask 130048
  %v620 = vsel %vm618, %v615, %v606
  %v622 = vsel %vm618, %v617, %v608
  %vm623 = vcmask 195584
  %v625 = vsel %vm623, %v620, %v611
  %v627 = vsel %vm623, %v622, %v613
  %v628 = vld [vmem:[%s8] sm:$0x1]
  %v630 = vperm.slane %v628, 0
  %v636 = vunpack.c.l.b16 %v73
  %v637 = vunpack.c.l.b16 %v74
  %v638 = vunpack.c.l.b16 %v75
  %v639 = vunpack.c.l.b16 %v76
  %v640 = vpack.c.b16 %v637, %v636
  %v641 = vpack.c.b16 %v639, %v638
  %vm644 = vcmask 261120
  %v645 = vsel %vm644, %v625, 0
  %v647 = vsel %vm644, %v627, 0
  %649 = vmatpush.bf16.msra.mxu0 0
  %650 = vmatpush.bf16.msra.mxu0 0
  %651 = vmatpush.bf16.msra.mxu0 0
  %652 = vmatpush.bf16.msra.mxu0 0
  %653 = vmatpush.bf16.msra.mxu0 0
  %654 = vmatpush.bf16.msra.mxu0 0
  %655 = vmatpush.bf16.msra.mxu0 %v641
  %656 = vmatpush.bf16.msra.mxu0 %v640
  %657 = vmatmul.bf16.gmra.mxu0 %v645
  %v658 = vpop.f32.mrf.mxu0
  %v659 = vadd.f32 %v630, %v658
  %v660 = vpop.f32.mrf.mxu0
  %v661 = vadd.f32 %v630, %v660
  %662 = vmatmul.bf16.gmra.mxu0 %v647
  %v663 = vpop.f32.mrf.mxu0
  %v664 = vadd.f32 %v630, %v663
  %v665 = vpop.f32.mrf.mxu0
  %v666 = vadd.f32 %v630, %v665
  %667 = vdwg.mxu0
  %v668 = vmax.f32 %v659, 0.0
  %v669 = vmax.f32 %v661, 0.0
  %v670 = vmax.f32 %v664, 0.0
  %v671 = vmax.f32 %v666, 0.0
  %v672 = vpack.c.bf16 %v668, %v668
  %v673 = vpack.c.bf16 %v669, %v669
  %v674 = vpack.c.bf16 %v670, %v670
  %v675 = vpack.c.bf16 %v671, %v671
  %v678 = vunpack.c.l.b16 %v672
  %v679 = vunpack.c.l.b16 %v673
  %v680 = vpack.c.b16 %v679, %v678
  %v681 = vrot.slane %v680, 7
  %v684 = vunpack.c.l.b16 %v674
  %v685 = vunpack.c.l.b16 %v675
  %v686 = vpack.c.b16 %v684, %v679
  %v687 = vpack.c.b16 %v685, %v685
  %vm688 = vcmask 1046528
  %v689 = vrot.slane %v686, 1
  %v690 = vrot.slane %v687, 1
  %v691 = vsel %vm688, %v689, %v690
  %vm692 = vcmask 1040384
  %v695 = vsel %vm692, 0, %v681
  %vm696 = vcmask 1041408
  %v698 = vsel %vm696, 0, %v691
  %v700 = vsel %vm692, %v690, 0
  %v703 = vrot.slane %v698, 1
  %v704 = vrot.slane %v700, 1
  %v705 = vsel %vm688, %v703, %v704
  %vm706 = vsmask.f32 7424
  %v707 = vshrl.u32 %v695, 16
  %v709 = vshll.u32 %v695, 16
  %v711 = vrot.slane %v709, 1
  %v712 = vor.u32 %v707, %v711
  %v713 = vshll.u32 %v698, 16
  %v715 = vrot.slane %v713, 1
  %v716 = vsel %vm706, %v712, %v715
  %v717 = vshrl.u32 %v698, 16
  %v719 = vrot.slane %v717, 1
  %v720 = vrot.slane %v713, 2
  %v721 = vor.u32 %v719, %v720
  %v722 = vshrl.u32 %v700, 16
  %v724 = vrot.slane %v722, 1
  %v725 = vshll.u32 %v700, 16
  %v727 = vrot.slane %v725, 2
  %v728 = vor.u32 %v724, %v727
  %v729 = vsel %vm583, %v721, %v728
  %v731 = vrot.slane %v695, 1
  %v732 = vsel %vm688, %v731, %v703
  %v733 = vrot.slane %v698, 2
  %v734 = vrot.slane %v700, 2
  %v735 = vsel %vm245, %v733, %v734
  %736 = vrot.lane.b32.xlu0 %v716, 64
  %v737 = vpop.permute.xlu0 %736
  %738 = vrot.lane.b32.xlu0 %v729, 64
  %v739 = vpop.permute.xlu0 %738
  %v741 = vsel %vm293, %v695, %v737
  %v745 = vsel %vm293, %v705, %v739
  %v747 = vld [vmem:[%s10] sm:$0x1]
  %v749 = vperm.slane %v747, 0
  %v775 = vunpack.c.l.b16 %v77
  %v776 = vunpack.c.l.b16 %v78
  %v777 = vunpack.c.l.b16 %v79
  %v778 = vunpack.c.l.b16 %v80
  %v779 = vunpack.c.l.b16 %v81
  %v780 = vunpack.c.l.b16 %v82
  %v781 = vunpack.c.l.b16 %v83
  %v782 = vunpack.c.l.b16 %v84
  %v783 = vunpack.c.l.b16 %v85
  %v784 = vunpack.c.l.b16 %v86
  %v785 = vunpack.c.l.b16 %v87
  %v786 = vunpack.c.l.b16 %v88
  %v787 = vunpack.c.l.b16 %v89
  %v788 = vunpack.c.l.b16 %v90
  %v789 = vunpack.c.l.b16 %v91
  %v790 = vunpack.c.l.b16 %v92
  %v791 = vunpack.c.l.b16 %v93
  %v792 = vunpack.c.l.b16 %v94
  %v793 = vunpack.c.l.b16 %v95
  %v794 = vunpack.c.l.b16 %v96
  %v795 = vunpack.c.l.b16 %v97
  %v796 = vunpack.c.l.b16 %v98
  %v797 = vunpack.c.l.b16 %v99
  %v798 = vunpack.c.l.b16 %v100
  %v799 = vpack.c.b16 %v776, %v775
  %v800 = vpack.c.b16 %v778, %v777
  %v801 = vpack.c.b16 %v780, %v779
  %v802 = vpack.c.b16 %v782, %v781
  %v803 = vpack.c.b16 %v784, %v783
  %v804 = vpack.c.b16 %v786, %v785
  %v805 = vpack.c.b16 %v788, %v787
  %v806 = vpack.c.b16 %v790, %v789
  %v807 = vpack.c.b16 %v792, %v791
  %v808 = vpack.c.b16 %v794, %v793
  %v809 = vpack.c.b16 %v796, %v795
  %v810 = vpack.c.b16 %v798, %v797
  %v824 = vsel %vm293, %v732, 0
  %v827 = vsel %vm293, %v735, 0
  %829 = vmatpush.bf16.msra.mxu0 %v806
  %830 = vmatpush.bf16.msra.mxu0 %v805
  %831 = vmatpush.bf16.msra.mxu0 %v804
  %832 = vmatpush.bf16.msra.mxu0 %v803
  %833 = vmatpush.bf16.msra.mxu0 %v802
  %834 = vmatpush.bf16.msra.mxu0 %v801
  %835 = vmatpush.bf16.msra.mxu0 %v800
  %836 = vmatpush.bf16.msra.mxu0 %v799
  %837 = vmatmul.bf16.gmra.mxu0 %v741
  %v838 = vpop.f32.mrf.mxu0
  %v839 = vadd.f32 %v749, %v838
  %v840 = vpop.f32.mrf.mxu0
  %v841 = vadd.f32 %v749, %v840
  %842 = vmatmul.bf16.gmra.mxu0 %v745
  %v843 = vpop.f32.mrf.mxu0
  %v844 = vadd.f32 %v749, %v843
  %v845 = vpop.f32.mrf.mxu0
  %v846 = vadd.f32 %v749, %v845
  %847 = vdwg.mxu0
  %848 = vmatpush.bf16.msra.mxu0 0
  %849 = vmatpush.bf16.msra.mxu0 0
  %850 = vmatpush.bf16.msra.mxu0 0
  %851 = vmatpush.bf16.msra.mxu0 0
  %852 = vmatpush.bf16.msra.mxu0 %v810
  %853 = vmatpush.bf16.msra.mxu0 %v809
  %854 = vmatpush.bf16.msra.mxu0 %v808
  %855 = vmatpush.bf16.msra.mxu0 %v807
  %856 = vmatmul.bf16.gmra.mxu0 %v824
  %v857 = vpop.f32.mrf.mxu0
  %v858 = vadd.f32 %v839, %v857
  %v859 = vpop.f32.mrf.mxu0
  %v860 = vadd.f32 %v841, %v859
  %861 = vmatmul.bf16.gmra.mxu0 %v827
  %v862 = vpop.f32.mrf.mxu0
  %v863 = vadd.f32 %v844, %v862
  %v864 = vpop.f32.mrf.mxu0
  %v865 = vadd.f32 %v846, %v864
  %866 = vdwg.mxu0
  %v867 = vtanh.pop %v858
  %v868 = vtanh.pop %v860
  %v869 = vtanh.pop %v863
  %v870 = vtanh.pop %v865
  %871 = vst.msk [vmem:[%s11] sm:$0xff] %vm163, %v867
  %872 = vst.msk [vmem:[%s11 + $0x8] sm:$0xff] %vm163, %v868
  %873 = vst.msk [vmem:[%s11 + $0x10] sm:$0xff] %vm163, %v869
  %874 = vst.msk [vmem:[%s11 + $0x18] sm:$0xff] %vm163, %v870
  // Predicated region
  $region46: #{conv_ae_forward.1} parent=0 // pred_check
    _
  $region47: #{conv_ae_forward.1} parent=0 // pred_check_branch
    %876 = sbr.rel (0) target = $region49
  $region48: #{conv_ae_forward.1} parent=0 // pred_region
    _
  $region49: #{conv_ae_forward.1} parent=0 // pred_fallthru
    _
  // Predicated region
  $region50: #{conv_ae_forward.1} parent=0 // pred_check
    _
  $region51: #{conv_ae_forward.1} parent=0 // pred_check_branch
    %878 = sbr.rel (0) target = $region53
  $region52: #{conv_ae_forward.1} parent=0 // pred_region
    _
  $region53: #{conv_ae_forward.1} parent=0 // pred_fallthru
    _

</llo_original>
